<compile_context>
chip_gen: v6e
topology: v6e:2x2x1
jax: 0.10.0
libtpu: 0.0.40
codegen_flags: <defaults>
</compile_context>

<pallas_src>
import functools

import jax
import jax.numpy as jnp
from jax.experimental import pallas as pl
from jax.experimental.pallas import tpu as pltpu


_LANE = 128
_VMEM_LIMIT = 48 * 1024 * 1024          # explicit scoped-VMEM limit (v7x-safe)
_TILE_BUDGET = 32 * 1024 * 1024         # per-kernel block budget for cv1


def _round_up(n, m):
    return ((n + m - 1) // m) * m


def _pick_tile_m(m, cin, cout, *, in_bytes=2, out_bytes=2,
                 budget=_TILE_BUDGET):
    """Largest M-tile that divides m and fits a double-buffered VMEM budget."""
    def fits(t):
        blk = 2 * t * (cin * in_bytes + cout * out_bytes)   # 2x in + 2x out
        return blk + cin * cout * 2 + cout * 4 <= budget
    for t in (1024, 512, 256, 128, 64, 32, 16, 8):
        if m % t == 0 and fits(t):
            return t
    # awkward m: largest divisor that fits and keeps sublane alignment
    for t in range(m, 0, -1):
        if m % t == 0 and fits(t) and (t % 8 == 0 or t == m):
            return t
    return m


def _cascade_windows(k):
    # pool_{a} o pool_{b} == pool_{a+b-1}; (5, 9, 13) -> successive 5x5 pools.
    wins, prev = [], 1
    for kk in k:
        w = kk - prev + 1
        assert w >= 1 and w % 2 == 1, "SPP kernel sizes must be odd & increasing"
        wins.append(w)
        prev = kk
    return tuple(wins)


# --------------------------- cv1: 1x1 conv+BN+SiLU ---------------------------

def _pw_conv_bn_silu_kernel(x_ref, w_ref, bias_ref, o_ref):
    # x: (tm, Cin) bf16, w: (Cin, Cout) bf16 (BN scale folded), bias: (1, Cout)
    y = jnp.dot(x_ref[...], w_ref[...], preferred_element_type=jnp.float32)
    y = y + bias_ref[...]
    o_ref[...] = (y * jax.nn.sigmoid(y)).astype(o_ref.dtype)    # SiLU, bf16 out


def pw_conv_bn_silu(x2d_bf16, w_bf16, bias):
    m, cin = x2d_bf16.shape
    cout = w_bf16.shape[1]
    tm = _pick_tile_m(m, cin, cout)
    return pl.pallas_call(
        _pw_conv_bn_silu_kernel,
        out_shape=jax.ShapeDtypeStruct((m, cout), jnp.bfloat16),
        grid=(m // tm,),
        in_specs=[
            pl.BlockSpec((tm, cin), lambda i: (i, 0)),
            pl.BlockSpec((cin, cout), lambda i: (0, 0)),
            pl.BlockSpec((1, cout), lambda i: (0, 0)),
        ],
        out_specs=pl.BlockSpec((tm, cout), lambda i: (i, 0)),
        compiler_params=pltpu.CompilerParams(
            dimension_semantics=("parallel",),
            vmem_limit_bytes=_VMEM_LIMIT),
        cost_estimate=pl.CostEstimate(
            flops=2 * m * cin * cout,
            transcendentals=m * cout,
            bytes_accessed=m * cin * 2 + cin * cout * 2 + m * cout * 2),
    )(x2d_bf16, w_bf16, bias)


# --------------------- fused pools (cascaded 5x5) + cv2 -----------------------

def _spp_pool_cv2_kernel(y1_ref, w2_ref, bias_ref, o_ref, pad_ref,
                         *, H, W, wins, pad_h, pad_w):
    hs, ws, cp = pad_ref.shape
    # finfo.min (not -inf) so a zero weight can never hit inf*0 = nan; with
    # stride-1 "same" pooling every window holds >=1 real activation, so the
    # padding value is never selected anyway (keep this invariant if strides /
    # dilation are ever added).
    neg = jnp.finfo(pad_ref.dtype).min
    # Border-only fill every step (interior is overwritten each pool stage);
    # safe regardless of how the batch grid is split across TensorCores.
    pad_ref[0:pad_h, :, :] = jnp.full((pad_h, ws, cp), neg, pad_ref.dtype)
    pad_ref[pad_h + H:hs, :, :] = jnp.full((hs - pad_h - H, ws, cp), neg,
                                           pad_ref.dtype)
    pad_ref[:, 0:pad_w, :] = jnp.full((hs, pad_w, cp), neg, pad_ref.dtype)
    pad_ref[:, pad_w + W:ws, :] = jnp.full((hs, ws - pad_w - W, cp), neg,
                                           pad_ref.dtype)

    M = H * W
    x = y1_ref[0]                                             # (H, W, cp) bf16
    acc = jnp.dot(x.reshape(M, cp), w2_ref[0],
                  preferred_element_type=jnp.float32)

    for j, win in enumerate(wins):
        pw = (win - 1) // 2
        # write current map into the padded scratch interior (lane-dense)
        pad_ref[pad_h:pad_h + H, pad_w:pad_w + W, :] = x
        xp = pad_ref[...]
        # separable stride-1 "same" max pool (bf16); channel (lane) untouched
        lo_w = pad_w - pw
        m = xp[:, lo_w:lo_w + W, :]
        for d in range(1, win):
            m = jnp.maximum(m, xp[:, lo_w + d:lo_w + d + W, :])
        lo_h = pad_h - pw
        x = m[lo_h:lo_h + H, :, :]
        for d in range(1, win):
            x = jnp.maximum(x, m[lo_h + d:lo_h + d + H, :, :])
        # accumulate this branch's share of cv2 (replaces the concat)
        acc = acc + jnp.dot(x.reshape(M, cp), w2_ref[j + 1],
                            preferred_element_type=jnp.float32)

    y = acc + bias_ref[...]                                   # BN scale folded
    y = y * jax.nn.sigmoid(y)                                 # SiLU
    o_ref[0] = y.reshape(H, W, -1).astype(o_ref.dtype)


def spp_pool_cv2(y1_nhwc, w2_stack, bias2, wins):
    n, H, W, cp = y1_nhwc.shape
    g, _, c2p = w2_stack.shape
    # W % 8 == 0 keeps interior scratch writes / reshapes relayout-free.
    assert W % 8 == 0 and H % 8 == 0, "SPP spatial dims must be multiples of 8"
    off = max((w - 1) // 2 for w in wins)
    pad_h = off                       # leading dim -> any offset is fine
    pad_w = _round_up(off, 16)        # bf16 sublane-pack aligned interior col
    hs, ws = H + pad_h + off, W + pad_w + off

    # VMEM accounting (double-buffered blocks + persistent scratch).
    blk_bytes = 2 * (H * W * cp * 2 + H * W * c2p * 4
                     + g * cp * c2p * 2 + c2p * 4)
    scratch_bytes = hs * ws * cp * 2
    # TODO(synk): at production feature-map sizes add a spatial-halo or
    # channel-group grid axis so this stays within v7x's 64 MiB VMEM.
    assert blk_bytes + scratch_bytes <= 44 * 1024 * 1024, (blk_bytes,
                                                           scratch_bytes)

    kern = functools.partial(_spp_pool_cv2_kernel, H=H, W=W, wins=tuple(wins),
                             pad_h=pad_h, pad_w=pad_w)
    return pl.pallas_call(
        kern,
        out_shape=jax.ShapeDtypeStruct((n, H, W, c2p), jnp.float32),
        grid=(n,),
        in_specs=[
            pl.BlockSpec((1, H, W, cp), lambda b: (b, 0, 0, 0)),
            pl.BlockSpec((g, cp, c2p), lambda b: (0, 0, 0)),
            pl.BlockSpec((1, c2p), lambda b: (0, 0)),
        ],
        out_specs=pl.BlockSpec((1, H, W, c2p), lambda b: (b, 0, 0, 0)),
        scratch_shapes=[pltpu.VMEM((hs, ws, cp), jnp.bfloat16)],
        compiler_params=pltpu.CompilerParams(
            dimension_semantics=("parallel",),
            vmem_limit_bytes=_VMEM_LIMIT),
        cost_estimate=pl.CostEstimate(
            flops=2 * n * H * W * cp * c2p * g
                  + 2 * n * H * W * cp * sum(w - 1 for w in wins),
            transcendentals=n * H * W * c2p,
            bytes_accessed=n * H * W * cp * 2 + n * H * W * c2p * 4
                           + w2_stack.size * 2),
    )(y1_nhwc, w2_stack, bias2)


# ------------------------------- Parameters -----------------------------------

def fold_bn(gamma, beta, mean, var, eps=1e-5):
    scale = gamma / jnp.sqrt(var + eps)
    bias = beta - mean * scale
    return scale.reshape(1, -1), bias.reshape(1, -1)


def init_spp_params(key, c1, c2, k=(5, 9, 13)):
    c_ = c1 // 2
    ks = jax.random.split(key, 10)
    w1 = jax.random.normal(ks[0], (c1, c_), jnp.float32) * 0.1
    g1 = 1.0 + 0.1 * jax.random.normal(ks[1], (c_,), jnp.float32)
    b1 = 0.1 * jax.random.normal(ks[2], (c_,), jnp.float32)
    m1 = 0.1 * jax.random.normal(ks[3], (c_,), jnp.float32)
    v1 = jnp.abs(jax.random.normal(ks[4], (c_,), jnp.float32)) + 0.5
    cin2 = c_ * (len(k) + 1)
    w2 = jax.random.normal(ks[5], (cin2, c2), jnp.float32) * 0.1
    g2 = 1.0 + 0.1 * jax.random.normal(ks[6], (c2,), jnp.float32)
    b2 = 0.1 * jax.random.normal(ks[7], (c2,), jnp.float32)
    m2 = 0.1 * jax.random.normal(ks[8], (c2,), jnp.float32)
    v2 = jnp.abs(jax.random.normal(ks[9], (c2,), jnp.float32)) + 0.5
    s1, bb1 = fold_bn(g1, b1, m1, v1)
    s2, bb2 = fold_bn(g2, b2, m2, v2)
    return dict(w1=w1, s1=s1, b1=bb1, w2=w2, s2=s2, b2=bb2)


def prepare_spp_params(params, k=(5, 9, 13)):
    """Fold BN scale into the weights, pad channels to lane width, cast MXU
    weights to bf16, and split cv2's weight into per-branch row blocks
    (replaces the concatenate)."""
    w1, s1, b1 = params["w1"], params["s1"], params["b1"]
    w2, s2, b2 = params["w2"], params["s2"], params["b2"]
    c1, c_ = w1.shape
    cin2, c2 = w2.shape
    g = len(k) + 1
    assert cin2 == g * c_
    cp = _round_up(c_, _LANE)
    c2p = _round_up(c2, _LANE)
    w1f = (w1 * s1).astype(jnp.bfloat16)                  # BN scale folded
    w1p = jnp.zeros((c1, cp), jnp.bfloat16).at[:, :c_].set(w1f)
    b1p = jnp.zeros((1, cp), jnp.float32).at[:, :c_].set(b1)
    w2f = (w2 * s2).astype(jnp.bfloat16)
    w2p = jnp.zeros((g, cp, c2p), jnp.bfloat16)
    for i in range(g):
        w2p = w2p.at[i, :c_, :c2].set(w2f[i * c_:(i + 1) * c_, :])
    b2p = jnp.zeros((1, c2p), jnp.float32).at[:, :c2].set(b2)
    return dict(w1p=w1p, b1p=b1p, w2p=w2p, b2p=b2p, c2=c2)


# -------------------------------- Forward -------------------------------------

def spp_forward(x_nchw, prepped, k=(5, 9, 13)):
    n, c1, H, W = x_nchw.shape
    cp = prepped["w1p"].shape[1]
    wins = _cascade_windows(k)
    # single boundary layout change; bf16 cast fuses into it, so cv1 reads bf16
    x_flat = jnp.transpose(x_nchw, (0, 2, 3, 1)).reshape(n * H * W, c1)
    x_flat = x_flat.astype(jnp.bfloat16)
    y1 = pw_conv_bn_silu(x_flat, prepped["w1p"], prepped["b1p"])
    y1 = y1.reshape(n, H, W, cp)                           # bf16, stays in HBM
    out = spp_pool_cv2(y1, prepped["w2p"], prepped["b2p"], wins)
    c2 = prepped["c2"]
    # TODO(synk): emit bf16 / NHWC directly when the downstream consumer allows
    # (this boundary transpose is an extra HBM pass kept for NCHW parity).
    return jnp.transpose(out[..., :c2], (0, 3, 1, 2))


# ------------------------------- Reference ------------------------------------

def _ref_pw(x2d, w, s, b):
    y = x2d @ w * s + b
    return y * jax.nn.sigmoid(y)


def _ref_pool(x_nchw, k):
    p = k // 2
    xp = jnp.pad(x_nchw, ((0, 0), (0, 0), (p, p), (p, p)),
                 constant_values=-jnp.inf)
    return jax.lax.reduce_window(xp, -jnp.inf, jax.lax.max,
                                 (1, 1, k, k), (1, 1, 1, 1), "VALID")


def spp_reference(x_nchw, params, k=(5, 9, 13)):
    n, c1, H, W = x_nchw.shape
    c_ = params["w1"].shape[1]
    x_flat = jnp.transpose(x_nchw, (0, 2, 3, 1)).reshape(n * H * W, c1)
    y1 = _ref_pw(x_flat, params["w1"], params["s1"], params["b1"])
    y1_nchw = jnp.transpose(y1.reshape(n, H, W, c_), (0, 3, 1, 2))
    cat = jnp.concatenate([y1_nchw] + [_ref_pool(y1_nchw, kk) for kk in k],
                          axis=1)
    cat_flat = jnp.transpose(cat, (0, 2, 3, 1)).reshape(n * H * W, -1)
    y2 = _ref_pw(cat_flat, params["w2"], params["s2"], params["b2"])
    c2 = params["w2"].shape[1]
    return jnp.transpose(y2.reshape(n, H, W, c2), (0, 3, 1, 2))


# --------------------------------- Main ----------------------------------------

if __name__ == "__main__":
    key = jax.random.PRNGKey(0)
    k_x, k_p = jax.random.split(key)

    N, c1, c2, H, W = 2, 4, 4, 16, 16
    x = jax.random.normal(k_x, (N, c1, H, W), jnp.float32)
    params = init_spp_params(k_p, c1, c2)
    prepped = prepare_spp_params(params)

    out = jax.block_until_ready(spp_forward(x, prepped))
    ref = spp_reference(x, params)

    assert out.shape == (N, c2, H, W), out.shape
    assert jnp.all(jnp.isfinite(out))
    max_err = float(jnp.max(jnp.abs(out - ref)))
    assert jnp.allclose(out, ref, rtol=2e-2, atol=2e-2), max_err

    print("KERNEL_OK")
</pallas_src>

<mosaic_0001>
module attributes {stable_mosaic.version = 11 : i64} {
  func.func @_pw_conv_bn_silu_kernel(%arg0: i32, %arg1: memref<512x4xbf16, #tpu.memory_space<vmem>>, %arg2: memref<4x128xbf16, #tpu.memory_space<vmem>>, %arg3: memref<1x128xf32, #tpu.memory_space<vmem>>, %arg4: memref<512x128xbf16, #tpu.memory_space<vmem>>) attributes {dimension_semantics = [#tpu.dimension_semantics<parallel>], iteration_bounds = array<i64: 1>, scalar_prefetch = 0 : i64, scratch_operands = 0 : i64, tpu.core_type = #tpu.core_type<tc>, window_params = [{transform_indices = @transform_0, window_bounds = array<i64: 512, 4>}, {pipeline_mode = #tpu.pipeline_mode<synchronous>, transform_indices = @transform_1, window_bounds = array<i64: 4, 128>}, {pipeline_mode = #tpu.pipeline_mode<synchronous>, transform_indices = @transform_2, window_bounds = array<i64: 1, 128>}, {transform_indices = @transform_3, window_bounds = array<i64: 512, 128>}]} {
    %c0 = arith.constant 0 : index
    %c0_0 = arith.constant 0 : index
    %0 = vector.load %arg1[%c0, %c0_0] : memref<512x4xbf16, #tpu.memory_space<vmem>>, vector<512x4xbf16>
    %c0_1 = arith.constant 0 : index
    %c0_2 = arith.constant 0 : index
    %1 = vector.load %arg2[%c0_1, %c0_2] : memref<4x128xbf16, #tpu.memory_space<vmem>>, vector<4x128xbf16>
    %cst = arith.constant dense<0.000000e+00> : vector<512x128xf32>
    %2 = tpu.matmul %0, %1, %cst {dimension_numbers = #tpu.dot_dimension_numbers<[1], [0], [0], [1], [0, 0, 1, 1], [], []>} : vector<512x4xbf16>, vector<4x128xbf16>, vector<512x128xf32> -> vector<512x128xf32>
    %c0_3 = arith.constant 0 : index
    %c0_4 = arith.constant 0 : index
    %3 = vector.load %arg3[%c0_3, %c0_4] : memref<1x128xf32, #tpu.memory_space<vmem>>, vector<1x128xf32>
    %4 = vector.broadcast %3 : vector<1x128xf32> to vector<512x128xf32>
    %5 = arith.addf %2, %4 : vector<512x128xf32>
    %6 = arith.negf %5 : vector<512x128xf32>
    %7 = math.exp %6 : vector<512x128xf32>
    %cst_5 = arith.constant 1.000000e+00 : f32
    %8 = vector.broadcast %cst_5 : f32 to vector<512x128xf32>
    %9 = arith.addf %8, %7 : vector<512x128xf32>
    %10 = arith.divf %8, %9 : vector<512x128xf32>
    %11 = arith.mulf %5, %10 : vector<512x128xf32>
    %12 = arith.truncf %11 : vector<512x128xf32> to vector<512x128xbf16>
    %c0_6 = arith.constant 0 : index
    %c0_7 = arith.constant 0 : index
    %13 = vector.load %arg4[%c0_6, %c0_7] : memref<512x128xbf16, #tpu.memory_space<vmem>>, vector<512x128xbf16>
    tpu.vector_store %arg4[%c0_6, %c0_7], %12 {strides = array<i32>} : memref<512x128xbf16, #tpu.memory_space<vmem>>, vector<512x128xbf16>,
    return
  }
  func.func @transform_0(%arg0: i32) -> (i32, i32) {
    %c0_i32 = arith.constant 0 : i32
    %c0_i32_0 = arith.constant 0 : i32
    return %arg0, %c0_i32 : i32, i32
  }
  func.func @transform_1(%arg0: i32) -> (i32, i32) {
    %c0_i32 = arith.constant 0 : i32
    %c0_i32_0 = arith.constant 0 : i32
    %c0_i32_1 = arith.constant 0 : i32
    return %c0_i32, %c0_i32_0 : i32, i32
  }
  func.func @transform_2(%arg0: i32) -> (i32, i32) {
    %c0_i32 = arith.constant 0 : i32
    %c0_i32_0 = arith.constant 0 : i32
    %c0_i32_1 = arith.constant 0 : i32
    return %c0_i32, %c0_i32_0 : i32, i32
  }
  func.func @transform_3(%arg0: i32) -> (i32, i32) {
    %c0_i32 = arith.constant 0 : i32
    %c0_i32_0 = arith.constant 0 : i32
    return %arg0, %c0_i32 : i32, i32
  }
}

</mosaic_0001>

<llo_original>
// kernel: tpu_custom_call.1
$region0: #{tpu_custom_call.1}
  #allocation0 [shape = 'u32[]', space=smem, size = 0x4, offset = 0x4, fixed_abs, tag = 'smem constant byte address 0x4 - core index']
  #allocation1 [shape = 'u32[144,128]{1,0:T(1,128)}', space=vmem, size = 0x12000, scoped, tag = 'internal scratch']
  %s0 = inlined_call_operand.vmem [shape: bf16[512,4], index: 0, kind: input, shape index: {}]
  %s1 = inlined_call_operand.vmem [shape: bf16[4,128], index: 1, kind: input, shape index: {}]
  %s2 = inlined_call_operand.vmem [shape: f32[1,128], index: 2, kind: input, shape index: {}]
  %s3 = inlined_call_operand.hbm [shape: bf16[512,128], index: 3, kind: output, shape index: {}]
  %s4 = sld [smem:[#allocation0]]
  $region22: #{tpu_custom_call.1} parent=0
    _
  %s6 = ssub.s32 1, %s4
  %s7 = scalar_select 0, %s6, %s4
  $region1: #{tpu_custom_call.1} parent=0
    #allocation2 [shape = 'u8[131072]{0}', space=vmem, size = 0x20000, scoped, tag = 'output window, operand 0, single buffered']
    #allocation3 [shape = 's32[1]{0}', space=sflag, size = 0x4, scoped, tag = 'scoped memory for tpu_custom_call.1']
    %8 = vsyncpa [#allocation3], 0
    // Predicated region
    $region2: #{tpu_custom_call.1} parent=1 // pred_check
      _
    $region3: #{tpu_custom_call.1} parent=1 // pred_check_branch
      %10 = sbr.rel (0) target = $region5
    $region4: #{tpu_custom_call.1} parent=1 // pred_region
      _
    $region5: #{tpu_custom_call.1} parent=1 // pred_fallthru
      _
    // Predicated region
    $region6: #{tpu_custom_call.1} parent=1 // pred_check
      _
    $region7: #{tpu_custom_call.1} parent=1 // pred_check_branch
      %12 = sbr.rel (0) target = $region9
    $region8: #{tpu_custom_call.1} parent=1 // pred_region
      _
    $region9: #{tpu_custom_call.1} parent=1 // pred_fallthru
      _
    // Predicated region
    $region10: #{tpu_custom_call.1} parent=1 // pred_check
      _
    $region11: #{tpu_custom_call.1} parent=1 // pred_check_branch
      %14 = sbr.rel (0) target = $region13
    $region12: #{tpu_custom_call.1} parent=1 // pred_region
      _
    $region13: #{tpu_custom_call.1} parent=1 // pred_fallthru
      _
    %v16 = vld [vmem:[%s0] sm:$0xf]
    %v17 = vld [vmem:[%s0 + $0x4] sm:$0xf]
    %v18 = vld [vmem:[%s0 + $0x8] sm:$0xf]
    %v19 = vld [vmem:[%s0 + $0xc] sm:$0xf]
    %v20 = vld [vmem:[%s0 + $0x10] sm:$0xf]
    %v21 = vld [vmem:[%s0 + $0x14] sm:$0xf]
    %v22 = vld [vmem:[%s0 + $0x18] sm:$0xf]
    %v23 = vld [vmem:[%s0 + $0x1c] sm:$0xf]
    %v24 = vld [vmem:[%s0 + $0x20] sm:$0xf]
    %v25 = vld [vmem:[%s0 + $0x24] sm:$0xf]
    %v26 = vld [vmem:[%s0 + $0x28] sm:$0xf]
    %v27 = vld [vmem:[%s0 + $0x2c] sm:$0xf]
    %v28 = vld [vmem:[%s0 + $0x30] sm:$0xf]
    %v29 = vld [vmem:[%s0 + $0x34] sm:$0xf]
    %v30 = vld [vmem:[%s0 + $0x38] sm:$0xf]
    %v31 = vld [vmem:[%s0 + $0x3c] sm:$0xf]
    %v32 = vld [vmem:[%s0 + $0x40] sm:$0xf]
    %v33 = vld [vmem:[%s0 + $0x44] sm:$0xf]
    %v34 = vld [vmem:[%s0 + $0x48] sm:$0xf]
    %v35 = vld [vmem:[%s0 + $0x4c] sm:$0xf]
    %v36 = vld [vmem:[%s0 + $0x50] sm:$0xf]
    %v37 = vld [vmem:[%s0 + $0x54] sm:$0xf]
    %v38 = vld [vmem:[%s0 + $0x58] sm:$0xf]
    %v39 = vld [vmem:[%s0 + $0x5c] sm:$0xf]
    %v40 = vld [vmem:[%s0 + $0x60] sm:$0xf]
    %v41 = vld [vmem:[%s0 + $0x64] sm:$0xf]
    %v42 = vld [vmem:[%s0 + $0x68] sm:$0xf]
    %v43 = vld [vmem:[%s0 + $0x6c] sm:$0xf]
    %v44 = vld [vmem:[%s0 + $0x70] sm:$0xf]
    %v45 = vld [vmem:[%s0 + $0x74] sm:$0xf]
    %v46 = vld [vmem:[%s0 + $0x78] sm:$0xf]
    %v47 = vld [vmem:[%s0 + $0x7c] sm:$0xf]
    %v48 = vld [vmem:[%s0 + $0x80] sm:$0xf]
    %v49 = vld [vmem:[%s0 + $0x84] sm:$0xf]
    %v50 = vld [vmem:[%s0 + $0x88] sm:$0xf]
    %v51 = vld [vmem:[%s0 + $0x8c] sm:$0xf]
    %v52 = vld [vmem:[%s0 + $0x90] sm:$0xf]
    %v53 = vld [vmem:[%s0 + $0x94] sm:$0xf]
    %v54 = vld [vmem:[%s0 + $0x98] sm:$0xf]
    %v55 = vld [vmem:[%s0 + $0x9c] sm:$0xf]
    %v56 = vld [vmem:[%s0 + $0xa0] sm:$0xf]
    %v57 = vld [vmem:[%s0 + $0xa4] sm:$0xf]
    %v58 = vld [vmem:[%s0 + $0xa8] sm:$0xf]
    %v59 = vld [vmem:[%s0 + $0xac] sm:$0xf]
    %v60 = vld [vmem:[%s0 + $0xb0] sm:$0xf]
    %v61 = vld [vmem:[%s0 + $0xb4] sm:$0xf]
    %v62 = vld [vmem:[%s0 + $0xb8] sm:$0xf]
    %v63 = vld [vmem:[%s0 + $0xbc] sm:$0xf]
    %v64 = vld [vmem:[%s0 + $0xc0] sm:$0xf]
    %v65 = vld [vmem:[%s0 + $0xc4] sm:$0xf]
    %v66 = vld [vmem:[%s0 + $0xc8] sm:$0xf]
    %v67 = vld [vmem:[%s0 + $0xcc] sm:$0xf]
    %v68 = vld [vmem:[%s0 + $0xd0] sm:$0xf]
    %v69 = vld [vmem:[%s0 + $0xd4] sm:$0xf]
    %v70 = vld [vmem:[%s0 + $0xd8] sm:$0xf]
    %v71 = vld [vmem:[%s0 + $0xdc] sm:$0xf]
    %v72 = vld [vmem:[%s0 + $0xe0] sm:$0xf]
    %v73 = vld [vmem:[%s0 + $0xe4] sm:$0xf]
    %v74 = vld [vmem:[%s0 + $0xe8] sm:$0xf]
    %v75 = vld [vmem:[%s0 + $0xec] sm:$0xf]
    %v76 = vld [vmem:[%s0 + $0xf0] sm:$0xf]
    %v77 = vld [vmem:[%s0 + $0xf4] sm:$0xf]
    %v78 = vld [vmem:[%s0 + $0xf8] sm:$0xf]
    %v79 = vld [vmem:[%s0 + $0xfc] sm:$0xf]
    %v80 = vld [vmem:[%s1] sm:$0x3]
    %v81 = vld [vmem:[%s2] sm:$0x1]
    %v83 = vlaneseq
    %v84 = vshrl.u32 %v83, 7
    %v85 = vsub.s32 0, %v84
    %v86 = vrot.slane %v81, %v85
    %v152 = vunpack.c.l.b16 %v16
    %v153 = vunpack.c.l.b16 %v17
    %v154 = vunpack.c.l.b16 %v18
    %v155 = vunpack.c.l.b16 %v19
    %v156 = vunpack.c.l.b16 %v20
    %v157 = vunpack.c.l.b16 %v21
    %v158 = vunpack.c.l.b16 %v22
    %v159 = vunpack.c.l.b16 %v23
    %v160 = vunpack.c.l.b16 %v24
    %v161 = vunpack.c.l.b16 %v25
    %v162 = vunpack.c.l.b16 %v26
    %v163 = vunpack.c.l.b16 %v27
    %v164 = vunpack.c.l.b16 %v28
    %v165 = vunpack.c.l.b16 %v29
    %v166 = vunpack.c.l.b16 %v30
    %v167 = vunpack.c.l.b16 %v31
    %v168 = vunpack.c.l.b16 %v32
    %v169 = vunpack.c.l.b16 %v33
    %v170 = vunpack.c.l.b16 %v34
    %v171 = vunpack.c.l.b16 %v35
    %v172 = vunpack.c.l.b16 %v36
    %v173 = vunpack.c.l.b16 %v37
    %v174 = vunpack.c.l.b16 %v38
    %v175 = vunpack.c.l.b16 %v39
    %v176 = vunpack.c.l.b16 %v40
    %v177 = vunpack.c.l.b16 %v41
    %v178 = vunpack.c.l.b16 %v42
    %v179 = vunpack.c.l.b16 %v43
    %v180 = vunpack.c.l.b16 %v44
    %v181 = vunpack.c.l.b16 %v45
    %v182 = vunpack.c.l.b16 %v46
    %v183 = vunpack.c.l.b16 %v47
    %v184 = vunpack.c.l.b16 %v48
    %v185 = vunpack.c.l.b16 %v49
    %v186 = vunpack.c.l.b16 %v50
    %v187 = vunpack.c.l.b16 %v51
    %v188 = vunpack.c.l.b16 %v52
    %v189 = vunpack.c.l.b16 %v53
    %v190 = vunpack.c.l.b16 %v54
    %v191 = vunpack.c.l.b16 %v55
    %v192 = vunpack.c.l.b16 %v56
    %v193 = vunpack.c.l.b16 %v57
    %v194 = vunpack.c.l.b16 %v58
    %v195 = vunpack.c.l.b16 %v59
    %v196 = vunpack.c.l.b16 %v60
    %v197 = vunpack.c.l.b16 %v61
    %v198 = vunpack.c.l.b16 %v62
    %v199 = vunpack.c.l.b16 %v63
    %v200 = vunpack.c.l.b16 %v64
    %v201 = vunpack.c.l.b16 %v65
    %v202 = vunpack.c.l.b16 %v66
    %v203 = vunpack.c.l.b16 %v67
    %v204 = vunpack.c.l.b16 %v68
    %v205 = vunpack.c.l.b16 %v69
    %v206 = vunpack.c.l.b16 %v70
    %v207 = vunpack.c.l.b16 %v71
    %v208 = vunpack.c.l.b16 %v72
    %v209 = vunpack.c.l.b16 %v73
    %v210 = vunpack.c.l.b16 %v74
    %v211 = vunpack.c.l.b16 %v75
    %v212 = vunpack.c.l.b16 %v76
    %v213 = vunpack.c.l.b16 %v77
    %v214 = vunpack.c.l.b16 %v78
    %v215 = vunpack.c.l.b16 %v79
    %v216 = vpack.c.b16 %v153, %v152
    %v217 = vpack.c.b16 %v155, %v154
    %v218 = vpack.c.b16 %v157, %v156
    %v219 = vpack.c.b16 %v159, %v158
    %v220 = vpack.c.b16 %v161, %v160
    %v221 = vpack.c.b16 %v163, %v162
    %v222 = vpack.c.b16 %v165, %v164
    %v223 = vpack.c.b16 %v167, %v166
    %v224 = vpack.c.b16 %v169, %v168
    %v225 = vpack.c.b16 %v171, %v170
    %v226 = vpack.c.b16 %v173, %v172
    %v227 = vpack.c.b16 %v175, %v174
    %v228 = vpack.c.b16 %v177, %v176
    %v229 = vpack.c.b16 %v179, %v178
    %v230 = vpack.c.b16 %v181, %v180
    %v231 = vpack.c.b16 %v183, %v182
    %v232 = vpack.c.b16 %v185, %v184
    %v233 = vpack.c.b16 %v187, %v186
    %v234 = vpack.c.b16 %v189, %v188
    %v235 = vpack.c.b16 %v191, %v190
    %v236 = vpack.c.b16 %v193, %v192
    %v237 = vpack.c.b16 %v195, %v194
    %v238 = vpack.c.b16 %v197, %v196
    %v239 = vpack.c.b16 %v199, %v198
    %v240 = vpack.c.b16 %v201, %v200
    %v241 = vpack.c.b16 %v203, %v202
    %v242 = vpack.c.b16 %v205, %v204
    %v243 = vpack.c.b16 %v207, %v206
    %v244 = vpack.c.b16 %v209, %v208
    %v245 = vpack.c.b16 %v211, %v210
    %v246 = vpack.c.b16 %v213, %v212
    %v247 = vpack.c.b16 %v215, %v214
    %vm248 = vcmask 31744
    %v250 = vsel %vm248, %v216, 0
    %v253 = vsel %vm248, %v217, 0
    %v256 = vsel %vm248, %v218, 0
    %v259 = vsel %vm248, %v219, 0
    %v262 = vsel %vm248, %v220, 0
    %v265 = vsel %vm248, %v221, 0
    %v268 = vsel %vm248, %v222, 0
    %v271 = vsel %vm248, %v223, 0
    %v274 = vsel %vm248, %v224, 0
    %v277 = vsel %vm248, %v225, 0
    %v280 = vsel %vm248, %v226, 0
    %v283 = vsel %vm248, %v227, 0
    %v286 = vsel %vm248, %v228, 0
    %v289 = vsel %vm248, %v229, 0
    %v292 = vsel %vm248, %v230, 0
    %v295 = vsel %vm248, %v231, 0
    %v298 = vsel %vm248, %v232, 0
    %v301 = vsel %vm248, %v233, 0
    %v304 = vsel %vm248, %v234, 0
    %v307 = vsel %vm248, %v235, 0
    %v310 = vsel %vm248, %v236, 0
    %v313 = vsel %vm248, %v237, 0
    %v316 = vsel %vm248, %v238, 0
    %v319 = vsel %vm248, %v239, 0
    %v322 = vsel %vm248, %v240, 0
    %v325 = vsel %vm248, %v241, 0
    %v328 = vsel %vm248, %v242, 0
    %v331 = vsel %vm248, %v243, 0
    %v334 = vsel %vm248, %v244, 0
    %v337 = vsel %vm248, %v245, 0
    %v340 = vsel %vm248, %v246, 0
    %v343 = vsel %vm248, %v247, 0
    %vm345 = vcmask 1041408
    %v347 = vsel %vm345, %v80, 0
    %349 = vmatprep.subr.bf16.mxu0 0
    %350 = vmatpush1.bf16.msra.mxu0 0
    %351 = vmatprep.subr.bf16.mxu0 0
    %352 = vmatpush1.bf16.msra.mxu0 0
    %353 = vmatprep.subr.bf16.mxu0 0
    %354 = vmatpush1.bf16.msra.mxu0 0
    %355 = vmatprep.subr.bf16.mxu0 0
    %356 = vmatpush1.bf16.msra.mxu0 0
    %357 = vmatprep.subr.bf16.mxu0 0
    %358 = vmatpush1.bf16.msra.mxu0 0
    %359 = vmatprep.subr.bf16.mxu0 0
    %360 = vmatpush1.bf16.msra.mxu0 0
    %361 = vmatprep.subr.bf16.mxu0 0
    %362 = vmatpush1.bf16.msra.mxu0 0
    %363 = vmatprep.subr.bf16.mxu0 0
    %364 = vmatpush1.bf16.msra.mxu0 %v347
    %365 = vmatprep.subr.bf16.mxu0 0
    %366 = vmatpush2.bf16.msra.mxu0 0
    %367 = vmatprep.subr.bf16.mxu0 0
    %368 = vmatpush2.bf16.msra.mxu0 0
    %369 = vmatprep.subr.bf16.mxu0 0
    %370 = vmatpush2.bf16.msra.mxu0 0
    %371 = vmatprep.subr.bf16.mxu0 0
    %372 = vmatpush2.bf16.msra.mxu0 0
    %373 = vmatprep.subr.bf16.mxu0 0
    %374 = vmatpush2.bf16.msra.mxu0 0
    %375 = vmatprep.subr.bf16.mxu0 0
    %376 = vmatpush2.bf16.msra.mxu0 0
    %377 = vmatprep.subr.bf16.mxu0 0
    %378 = vmatpush2.bf16.msra.mxu0 0
    %379 = vmatprep.subr.bf16.mxu0 0
    %380 = vmatpush2.bf16.msra.mxu0 0
    %381 = vmatprep.mubr.bf16.mxu0 0
    %382 = vmatmul.mubr.bf16.gmra.mxu0 %v250
    %v383 = vpop.f32.mrf.mxu0
    %v384 = vadd.f32 %v86, %v383
    %v385 = vpop.f32.mrf.mxu0
    %v386 = vpop.f32.mrf.mxu0
    %v387 = vadd.f32 %v86, %v386
    %v388 = vpop.f32.mrf.mxu0
    %389 = vmatprep.mubr.bf16.mxu0 0
    %390 = vmatmul.mubr.bf16.gmra.mxu0 %v253
    %v391 = vpop.f32.mrf.mxu0
    %v392 = vadd.f32 %v86, %v391
    %v393 = vpop.f32.mrf.mxu0
    %v394 = vpop.f32.mrf.mxu0
    %v395 = vadd.f32 %v86, %v394
    %v396 = vpop.f32.mrf.mxu0
    %397 = vmatprep.mubr.bf16.mxu0 0
    %398 = vmatmul.mubr.bf16.gmra.mxu0 %v256
    %v399 = vpop.f32.mrf.mxu0
    %v400 = vadd.f32 %v86, %v399
    %v401 = vpop.f32.mrf.mxu0
    %v402 = vpop.f32.mrf.mxu0
    %v403 = vadd.f32 %v86, %v402
    %v404 = vpop.f32.mrf.mxu0
    %405 = vmatprep.mubr.bf16.mxu0 0
    %406 = vmatmul.mubr.bf16.gmra.mxu0 %v259
    %v407 = vpop.f32.mrf.mxu0
    %v408 = vadd.f32 %v86, %v407
    %v409 = vpop.f32.mrf.mxu0
    %v410 = vpop.f32.mrf.mxu0
    %v411 = vadd.f32 %v86, %v410
    %v412 = vpop.f32.mrf.mxu0
    %413 = vmatprep.mubr.bf16.mxu0 0
    %414 = vmatmul.mubr.bf16.gmra.mxu0 %v262
    %v415 = vpop.f32.mrf.mxu0
    %v416 = vadd.f32 %v86, %v415
    %v417 = vpop.f32.mrf.mxu0
    %v418 = vpop.f32.mrf.mxu0
    %v419 = vadd.f32 %v86, %v418
    %v420 = vpop.f32.mrf.mxu0
    %421 = vmatprep.mubr.bf16.mxu0 0
    %422 = vmatmul.mubr.bf16.gmra.mxu0 %v265
    %v423 = vpop.f32.mrf.mxu0
    %v424 = vadd.f32 %v86, %v423
    %v425 = vpop.f32.mrf.mxu0
    %v426 = vpop.f32.mrf.mxu0
    %v427 = vadd.f32 %v86, %v426
    %v428 = vpop.f32.mrf.mxu0
    %429 = vmatprep.mubr.bf16.mxu0 0
    %430 = vmatmul.mubr.bf16.gmra.mxu0 %v268
    %v431 = vpop.f32.mrf.mxu0
    %v432 = vadd.f32 %v86, %v431
    %v433 = vpop.f32.mrf.mxu0
    %v434 = vpop.f32.mrf.mxu0
    %v435 = vadd.f32 %v86, %v434
    %v436 = vpop.f32.mrf.mxu0
    %437 = vmatprep.mubr.bf16.mxu0 0
    %438 = vmatmul.mubr.bf16.gmra.mxu0 %v271
    %v439 = vpop.f32.mrf.mxu0
    %v440 = vadd.f32 %v86, %v439
    %v441 = vpop.f32.mrf.mxu0
    %v442 = vpop.f32.mrf.mxu0
    %v443 = vadd.f32 %v86, %v442
    %v444 = vpop.f32.mrf.mxu0
    %445 = vmatprep.mubr.bf16.mxu0 0
    %446 = vmatmul.mubr.bf16.gmra.mxu0 %v274
    %v447 = vpop.f32.mrf.mxu0
    %v448 = vadd.f32 %v86, %v447
    %v449 = vpop.f32.mrf.mxu0
    %v450 = vpop.f32.mrf.mxu0
    %v451 = vadd.f32 %v86, %v450
    %v452 = vpop.f32.mrf.mxu0
    %453 = vmatprep.mubr.bf16.mxu0 0
    %454 = vmatmul.mubr.bf16.gmra.mxu0 %v277
    %v455 = vpop.f32.mrf.mxu0
    %v456 = vadd.f32 %v86, %v455
    %v457 = vpop.f32.mrf.mxu0
    %v458 = vpop.f32.mrf.mxu0
    %v459 = vadd.f32 %v86, %v458
    %v460 = vpop.f32.mrf.mxu0
    %461 = vmatprep.mubr.bf16.mxu0 0
    %462 = vmatmul.mubr.bf16.gmra.mxu0 %v280
    %v463 = vpop.f32.mrf.mxu0
    %v464 = vadd.f32 %v86, %v463
    %v465 = vpop.f32.mrf.mxu0
    %v466 = vpop.f32.mrf.mxu0
    %v467 = vadd.f32 %v86, %v466
    %v468 = vpop.f32.mrf.mxu0
    %469 = vmatprep.mubr.bf16.mxu0 0
    %470 = vmatmul.mubr.bf16.gmra.mxu0 %v283
    %v471 = vpop.f32.mrf.mxu0
    %v472 = vadd.f32 %v86, %v471
    %v473 = vpop.f32.mrf.mxu0
    %v474 = vpop.f32.mrf.mxu0
    %v475 = vadd.f32 %v86, %v474
    %v476 = vpop.f32.mrf.mxu0
    %477 = vmatprep.mubr.bf16.mxu0 0
    %478 = vmatmul.mubr.bf16.gmra.mxu0 %v286
    %v479 = vpop.f32.mrf.mxu0
    %v480 = vadd.f32 %v86, %v479
    %v481 = vpop.f32.mrf.mxu0
    %v482 = vpop.f32.mrf.mxu0
    %v483 = vadd.f32 %v86, %v482
    %v484 = vpop.f32.mrf.mxu0
    %485 = vmatprep.mubr.bf16.mxu0 0
    %486 = vmatmul.mubr.bf16.gmra.mxu0 %v289
    %v487 = vpop.f32.mrf.mxu0
    %v488 = vadd.f32 %v86, %v487
    %v489 = vpop.f32.mrf.mxu0
    %v490 = vpop.f32.mrf.mxu0
    %v491 = vadd.f32 %v86, %v490
    %v492 = vpop.f32.mrf.mxu0
    %493 = vmatprep.mubr.bf16.mxu0 0
    %494 = vmatmul.mubr.bf16.gmra.mxu0 %v292
    %v495 = vpop.f32.mrf.mxu0
    %v496 = vadd.f32 %v86, %v495
    %v497 = vpop.f32.mrf.mxu0
    %v498 = vpop.f32.mrf.mxu0
    %v499 = vadd.f32 %v86, %v498
    %v500 = vpop.f32.mrf.mxu0
    %501 = vmatprep.mubr.bf16.mxu0 0
    %502 = vmatmul.mubr.bf16.gmra.mxu0 %v295
    %v503 = vpop.f32.mrf.mxu0
    %v504 = vadd.f32 %v86, %v503
    %v505 = vpop.f32.mrf.mxu0
    %v506 = vpop.f32.mrf.mxu0
    %v507 = vadd.f32 %v86, %v506
    %v508 = vpop.f32.mrf.mxu0
    %509 = vmatprep.mubr.bf16.mxu0 0
    %510 = vmatmul.mubr.bf16.gmra.mxu0 %v298
    %v511 = vpop.f32.mrf.mxu0
    %v512 = vadd.f32 %v86, %v511
    %v513 = vpop.f32.mrf.mxu0
    %v514 = vpop.f32.mrf.mxu0
    %v515 = vadd.f32 %v86, %v514
    %v516 = vpop.f32.mrf.mxu0
    %517 = vmatprep.mubr.bf16.mxu0 0
    %518 = vmatmul.mubr.bf16.gmra.mxu0 %v301
    %v519 = vpop.f32.mrf.mxu0
    %v520 = vadd.f32 %v86, %v519
    %v521 = vpop.f32.mrf.mxu0
    %v522 = vpop.f32.mrf.mxu0
    %v523 = vadd.f32 %v86, %v522
    %v524 = vpop.f32.mrf.mxu0
    %525 = vmatprep.mubr.bf16.mxu0 0
    %526 = vmatmul.mubr.bf16.gmra.mxu0 %v304
    %v527 = vpop.f32.mrf.mxu0
    %v528 = vadd.f32 %v86, %v527
    %v529 = vpop.f32.mrf.mxu0
    %v530 = vpop.f32.mrf.mxu0
    %v531 = vadd.f32 %v86, %v530
    %v532 = vpop.f32.mrf.mxu0
    %533 = vmatprep.mubr.bf16.mxu0 0
    %534 = vmatmul.mubr.bf16.gmra.mxu0 %v307
    %v535 = vpop.f32.mrf.mxu0
    %v536 = vadd.f32 %v86, %v535
    %v537 = vpop.f32.mrf.mxu0
    %v538 = vpop.f32.mrf.mxu0
    %v539 = vadd.f32 %v86, %v538
    %v540 = vpop.f32.mrf.mxu0
    %541 = vmatprep.mubr.bf16.mxu0 0
    %542 = vmatmul.mubr.bf16.gmra.mxu0 %v310
    %v543 = vpop.f32.mrf.mxu0
    %v544 = vadd.f32 %v86, %v543
    %v545 = vpop.f32.mrf.mxu0
    %v546 = vpop.f32.mrf.mxu0
    %v547 = vadd.f32 %v86, %v546
    %v548 = vpop.f32.mrf.mxu0
    %549 = vmatprep.mubr.bf16.mxu0 0
    %550 = vmatmul.mubr.bf16.gmra.mxu0 %v313
    %v551 = vpop.f32.mrf.mxu0
    %v552 = vadd.f32 %v86, %v551
    %v553 = vpop.f32.mrf.mxu0
    %v554 = vpop.f32.mrf.mxu0
    %v555 = vadd.f32 %v86, %v554
    %v556 = vpop.f32.mrf.mxu0
    %557 = vmatprep.mubr.bf16.mxu0 0
    %558 = vmatmul.mubr.bf16.gmra.mxu0 %v316
    %v559 = vpop.f32.mrf.mxu0
    %v560 = vadd.f32 %v86, %v559
    %v561 = vpop.f32.mrf.mxu0
    %v562 = vpop.f32.mrf.mxu0
    %v563 = vadd.f32 %v86, %v562
    %v564 = vpop.f32.mrf.mxu0
    %565 = vmatprep.mubr.bf16.mxu0 0
    %566 = vmatmul.mubr.bf16.gmra.mxu0 %v319
    %v567 = vpop.f32.mrf.mxu0
    %v568 = vadd.f32 %v86, %v567
    %v569 = vpop.f32.mrf.mxu0
    %v570 = vpop.f32.mrf.mxu0
    %v571 = vadd.f32 %v86, %v570
    %v572 = vpop.f32.mrf.mxu0
    %573 = vmatprep.mubr.bf16.mxu0 0
    %574 = vmatmul.mubr.bf16.gmra.mxu0 %v322
    %v575 = vpop.f32.mrf.mxu0
    %v576 = vadd.f32 %v86, %v575
    %v577 = vpop.f32.mrf.mxu0
    %v578 = vpop.f32.mrf.mxu0
    %v579 = vadd.f32 %v86, %v578
    %v580 = vpop.f32.mrf.mxu0
    %581 = vmatprep.mubr.bf16.mxu0 0
    %582 = vmatmul.mubr.bf16.gmra.mxu0 %v325
    %v583 = vpop.f32.mrf.mxu0
    %v584 = vadd.f32 %v86, %v583
    %v585 = vpop.f32.mrf.mxu0
    %v586 = vpop.f32.mrf.mxu0
    %v587 = vadd.f32 %v86, %v586
    %v588 = vpop.f32.mrf.mxu0
    %589 = vmatprep.mubr.bf16.mxu0 0
    %590 = vmatmul.mubr.bf16.gmra.mxu0 %v328
    %v591 = vpop.f32.mrf.mxu0
    %v592 = vadd.f32 %v86, %v591
    %v593 = vpop.f32.mrf.mxu0
    %v594 = vpop.f32.mrf.mxu0
    %v595 = vadd.f32 %v86, %v594
    %v596 = vpop.f32.mrf.mxu0
    %597 = vmatprep.mubr.bf16.mxu0 0
    %598 = vmatmul.mubr.bf16.gmra.mxu0 %v331
    %v599 = vpop.f32.mrf.mxu0
    %v600 = vadd.f32 %v86, %v599
    %v601 = vpop.f32.mrf.mxu0
    %v602 = vpop.f32.mrf.mxu0
    %v603 = vadd.f32 %v86, %v602
    %v604 = vpop.f32.mrf.mxu0
    %605 = vmatprep.mubr.bf16.mxu0 0
    %606 = vmatmul.mubr.bf16.gmra.mxu0 %v334
    %v607 = vpop.f32.mrf.mxu0
    %v608 = vadd.f32 %v86, %v607
    %v609 = vpop.f32.mrf.mxu0
    %v610 = vpop.f32.mrf.mxu0
    %v611 = vadd.f32 %v86, %v610
    %v612 = vpop.f32.mrf.mxu0
    %613 = vmatprep.mubr.bf16.mxu0 0
    %614 = vmatmul.mubr.bf16.gmra.mxu0 %v337
    %v615 = vpop.f32.mrf.mxu0
    %v616 = vadd.f32 %v86, %v615
    %v617 = vpop.f32.mrf.mxu0
    %v618 = vpop.f32.mrf.mxu0
    %v619 = vadd.f32 %v86, %v618
    %v620 = vpop.f32.mrf.mxu0
    %621 = vmatprep.mubr.bf16.mxu0 0
    %622 = vmatmul.mubr.bf16.gmra.mxu0 %v340
    %v623 = vpop.f32.mrf.mxu0
    %v624 = vadd.f32 %v86, %v623
    %v625 = vpop.f32.mrf.mxu0
    %v626 = vpop.f32.mrf.mxu0
    %v627 = vadd.f32 %v86, %v626
    %v628 = vpop.f32.mrf.mxu0
    %629 = vmatprep.mubr.bf16.mxu0 0
    %630 = vmatmul.mubr.bf16.gmra.mxu0 %v343
    %v631 = vpop.f32.mrf.mxu0
    %v632 = vadd.f32 %v86, %v631
    %v633 = vpop.f32.mrf.mxu0
    %v634 = vpop.f32.mrf.mxu0
    %v635 = vadd.f32 %v86, %v634
    %v636 = vpop.f32.mrf.mxu0
    %637 = vdwg.mxu0
    %v638 = vxor.u32 %v384, 2147483648
    %v639 = vxor.u32 %v387, 2147483648
    %v640 = vxor.u32 %v392, 2147483648
    %v641 = vxor.u32 %v395, 2147483648
    %v642 = vxor.u32 %v400, 2147483648
    %v643 = vxor.u32 %v403, 2147483648
    %v644 = vxor.u32 %v408, 2147483648
    %v645 = vxor.u32 %v411, 2147483648
    %v646 = vxor.u32 %v416, 2147483648
    %v647 = vxor.u32 %v419, 2147483648
    %v648 = vxor.u32 %v424, 2147483648
    %v649 = vxor.u32 %v427, 2147483648
    %v650 = vxor.u32 %v432, 2147483648
    %v651 = vxor.u32 %v435, 2147483648
    %v652 = vxor.u32 %v440, 2147483648
    %v653 = vxor.u32 %v443, 2147483648
    %v654 = vxor.u32 %v448, 2147483648
    %v655 = vxor.u32 %v451, 2147483648
    %v656 = vxor.u32 %v456, 2147483648
    %v657 = vxor.u32 %v459, 2147483648
    %v658 = vxor.u32 %v464, 2147483648
    %v659 = vxor.u32 %v467, 2147483648
    %v660 = vxor.u32 %v472, 2147483648
    %v661 = vxor.u32 %v475, 2147483648
    %v662 = vxor.u32 %v480, 2147483648
    %v663 = vxor.u32 %v483, 2147483648
    %v664 = vxor.u32 %v488, 2147483648
    %v665 = vxor.u32 %v491, 2147483648
    %v666 = vxor.u32 %v496, 2147483648
    %v667 = vxor.u32 %v499, 2147483648
    %v668 = vxor.u32 %v504, 2147483648
    %v669 = vxor.u32 %v507, 2147483648
    %v670 = vxor.u32 %v512, 2147483648
    %v671 = vxor.u32 %v515, 2147483648
    %v672 = vxor.u32 %v520, 2147483648
    %v673 = vxor.u32 %v523, 2147483648
    %v674 = vxor.u32 %v528, 2147483648
    %v675 = vxor.u32 %v531, 2147483648
    %v676 = vxor.u32 %v536, 2147483648
    %v677 = vxor.u32 %v539, 2147483648
    %v678 = vxor.u32 %v544, 2147483648
    %v679 = vxor.u32 %v547, 2147483648
    %v680 = vxor.u32 %v552, 2147483648
    %v681 = vxor.u32 %v555, 2147483648
    %v682 = vxor.u32 %v560, 2147483648
    %v683 = vxor.u32 %v563, 2147483648
    %v684 = vxor.u32 %v568, 2147483648
    %v685 = vxor.u32 %v571, 2147483648
    %v686 = vxor.u32 %v576, 2147483648
    %v687 = vxor.u32 %v579, 2147483648
    %v688 = vxor.u32 %v584, 2147483648
    %v689 = vxor.u32 %v587, 2147483648
    %v690 = vxor.u32 %v592, 2147483648
    %v691 = vxor.u32 %v595, 2147483648
    %v692 = vxor.u32 %v600, 2147483648
    %v693 = vxor.u32 %v603, 2147483648
    %v694 = vxor.u32 %v608, 2147483648
    %v695 = vxor.u32 %v611, 2147483648
    %v696 = vxor.u32 %v616, 2147483648
    %v697 = vxor.u32 %v619, 2147483648
    %v698 = vxor.u32 %v624, 2147483648
    %v699 = vxor.u32 %v627, 2147483648
    %v700 = vxor.u32 %v632, 2147483648
    %v701 = vxor.u32 %v635, 2147483648
    %v702 = vmul.f32 %v638, 1.442695
    %v703 = vpow.pop %v702
    %v704 = vmul.f32 %v639, 1.442695
    %v705 = vpow.pop %v704
    %v706 = vmul.f32 %v640, 1.442695
    %v707 = vpow.pop %v706
    %v708 = vmul.f32 %v641, 1.442695
    %v709 = vpow.pop %v708
    %v710 = vmul.f32 %v642, 1.442695
    %v711 = vpow.pop %v710
    %v712 = vmul.f32 %v643, 1.442695
    %v713 = vpow.pop %v712
    %v714 = vmul.f32 %v644, 1.442695
    %v715 = vpow.pop %v714
    %v716 = vmul.f32 %v645, 1.442695
    %v717 = vpow.pop %v716
    %v718 = vmul.f32 %v646, 1.442695
    %v719 = vpow.pop %v718
    %v720 = vmul.f32 %v647, 1.442695
    %v721 = vpow.pop %v720
    %v722 = vmul.f32 %v648, 1.442695
    %v723 = vpow.pop %v722
    %v724 = vmul.f32 %v649, 1.442695
    %v725 = vpow.pop %v724
    %v726 = vmul.f32 %v650, 1.442695
    %v727 = vpow.pop %v726
    %v728 = vmul.f32 %v651, 1.442695
    %v729 = vpow.pop %v728
    %v730 = vmul.f32 %v652, 1.442695
    %v731 = vpow.pop %v730
    %v732 = vmul.f32 %v653, 1.442695
    %v733 = vpow.pop %v732
    %v734 = vmul.f32 %v654, 1.442695
    %v735 = vpow.pop %v734
    %v736 = vmul.f32 %v655, 1.442695
    %v737 = vpow.pop %v736
    %v738 = vmul.f32 %v656, 1.442695
    %v739 = vpow.pop %v738
    %v740 = vmul.f32 %v657, 1.442695
    %v741 = vpow.pop %v740
    %v742 = vmul.f32 %v658, 1.442695
    %v743 = vpow.pop %v742
    %v744 = vmul.f32 %v659, 1.442695
    %v745 = vpow.pop %v744
    %v746 = vmul.f32 %v660, 1.442695
    %v747 = vpow.pop %v746
    %v748 = vmul.f32 %v661, 1.442695
    %v749 = vpow.pop %v748
    %v750 = vmul.f32 %v662, 1.442695
    %v751 = vpow.pop %v750
    %v752 = vmul.f32 %v663, 1.442695
    %v753 = vpow.pop %v752
    %v754 = vmul.f32 %v664, 1.442695
    %v755 = vpow.pop %v754
    %v756 = vmul.f32 %v665, 1.442695
    %v757 = vpow.pop %v756
    %v758 = vmul.f32 %v666, 1.442695
    %v759 = vpow.pop %v758
    %v760 = vmul.f32 %v667, 1.442695
    %v761 = vpow.pop %v760
    %v762 = vmul.f32 %v668, 1.442695
    %v763 = vpow.pop %v762
    %v764 = vmul.f32 %v669, 1.442695
    %v765 = vpow.pop %v764
    %v766 = vmul.f32 %v670, 1.442695
    %v767 = vpow.pop %v766
    %v768 = vmul.f32 %v671, 1.442695
    %v769 = vpow.pop %v768
    %v770 = vmul.f32 %v672, 1.442695
    %v771 = vpow.pop %v770
    %v772 = vmul.f32 %v673, 1.442695
    %v773 = vpow.pop %v772
    %v774 = vmul.f32 %v674, 1.442695
    %v775 = vpow.pop %v774
    %v776 = vmul.f32 %v675, 1.442695
    %v777 = vpow.pop %v776
    %v778 = vmul.f32 %v676, 1.442695
    %v779 = vpow.pop %v778
    %v780 = vmul.f32 %v677, 1.442695
    %v781 = vpow.pop %v780
    %v782 = vmul.f32 %v678, 1.442695
    %v783 = vpow.pop %v782
    %v784 = vmul.f32 %v679, 1.442695
    %v785 = vpow.pop %v784
    %v786 = vmul.f32 %v680, 1.442695
    %v787 = vpow.pop %v786
    %v788 = vmul.f32 %v681, 1.442695
    %v789 = vpow.pop %v788
    %v790 = vmul.f32 %v682, 1.442695
    %v791 = vpow.pop %v790
    %v792 = vmul.f32 %v683, 1.442695
    %v793 = vpow.pop %v792
    %v794 = vmul.f32 %v684, 1.442695
    %v795 = vpow.pop %v794
    %v796 = vmul.f32 %v685, 1.442695
    %v797 = vpow.pop %v796
    %v798 = vmul.f32 %v686, 1.442695
    %v799 = vpow.pop %v798
    %v800 = vmul.f32 %v687, 1.442695
    %v801 = vpow.pop %v800
    %v802 = vmul.f32 %v688, 1.442695
    %v803 = vpow.pop %v802
    %v804 = vmul.f32 %v689, 1.442695
    %v805 = vpow.pop %v804
    %v806 = vmul.f32 %v690, 1.442695
    %v807 = vpow.pop %v806
    %v808 = vmul.f32 %v691, 1.442695
    %v809 = vpow.pop %v808
    %v810 = vmul.f32 %v692, 1.442695
    %v811 = vpow.pop %v810
    %v812 = vmul.f32 %v693, 1.442695
    %v813 = vpow.pop %v812
    %v814 = vmul.f32 %v694, 1.442695
    %v815 = vpow.pop %v814
    %v816 = vmul.f32 %v695, 1.442695
    %v817 = vpow.pop %v816
    %v818 = vmul.f32 %v696, 1.442695
    %v819 = vpow.pop %v818
    %v820 = vmul.f32 %v697, 1.442695
    %v821 = vpow.pop %v820
    %v822 = vmul.f32 %v698, 1.442695
    %v823 = vpow.pop %v822
    %v824 = vmul.f32 %v699, 1.442695
    %v825 = vpow.pop %v824
    %v826 = vmul.f32 %v700, 1.442695
    %v827 = vpow.pop %v826
    %v828 = vmul.f32 %v701, 1.442695
    %v829 = vpow.pop %v828
    %v830 = vadd.f32 %v703, 1.0
    %v831 = vadd.f32 %v705, 1.0
    %v832 = vadd.f32 %v707, 1.0
    %v833 = vadd.f32 %v709, 1.0
    %v834 = vadd.f32 %v711, 1.0
    %v835 = vadd.f32 %v713, 1.0
    %v836 = vadd.f32 %v715, 1.0
    %v837 = vadd.f32 %v717, 1.0
    %v838 = vadd.f32 %v719, 1.0
    %v839 = vadd.f32 %v721, 1.0
    %v840 = vadd.f32 %v723, 1.0
    %v841 = vadd.f32 %v725, 1.0
    %v842 = vadd.f32 %v727, 1.0
    %v843 = vadd.f32 %v729, 1.0
    %v844 = vadd.f32 %v731, 1.0
    %v845 = vadd.f32 %v733, 1.0
    %v846 = vadd.f32 %v735, 1.0
    %v847 = vadd.f32 %v737, 1.0
    %v848 = vadd.f32 %v739, 1.0
    %v849 = vadd.f32 %v741, 1.0
    %v850 = vadd.f32 %v743, 1.0
    %v851 = vadd.f32 %v745, 1.0
    %v852 = vadd.f32 %v747, 1.0
    %v853 = vadd.f32 %v749, 1.0
    %v854 = vadd.f32 %v751, 1.0
    %v855 = vadd.f32 %v753, 1.0
    %v856 = vadd.f32 %v755, 1.0
    %v857 = vadd.f32 %v757, 1.0
    %v858 = vadd.f32 %v759, 1.0
    %v859 = vadd.f32 %v761, 1.0
    %v860 = vadd.f32 %v763, 1.0
    %v861 = vadd.f32 %v765, 1.0
    %v862 = vadd.f32 %v767, 1.0
    %v863 = vadd.f32 %v769, 1.0
    %v864 = vadd.f32 %v771, 1.0
    %v865 = vadd.f32 %v773, 1.0
    %v866 = vadd.f32 %v775, 1.0
    %v867 = vadd.f32 %v777, 1.0
    %v868 = vadd.f32 %v779, 1.0
    %v869 = vadd.f32 %v781, 1.0
    %v870 = vadd.f32 %v783, 1.0
    %v871 = vadd.f32 %v785, 1.0
    %v872 = vadd.f32 %v787, 1.0
    %v873 = vadd.f32 %v789, 1.0
    %v874 = vadd.f32 %v791, 1.0
    %v875 = vadd.f32 %v793, 1.0
    %v876 = vadd.f32 %v795, 1.0
    %v877 = vadd.f32 %v797, 1.0
    %v878 = vadd.f32 %v799, 1.0
    %v879 = vadd.f32 %v801, 1.0
    %v880 = vadd.f32 %v803, 1.0
    %v881 = vadd.f32 %v805, 1.0
    %v882 = vadd.f32 %v807, 1.0
    %v883 = vadd.f32 %v809, 1.0
    %v884 = vadd.f32 %v811, 1.0
    %v885 = vadd.f32 %v813, 1.0
    %v886 = vadd.f32 %v815, 1.0
    %v887 = vadd.f32 %v817, 1.0
    %v888 = vadd.f32 %v819, 1.0
    %v889 = vadd.f32 %v821, 1.0
    %v890 = vadd.f32 %v823, 1.0
    %v891 = vadd.f32 %v825, 1.0
    %v892 = vadd.f32 %v827, 1.0
    %v893 = vadd.f32 %v829, 1.0
    %v894 = vrcp.pop %v830
    %v895 = vmul.f32 1.0, %v894
    %v896 = vrcp.pop %v831
    %v897 = vmul.f32 1.0, %v896
    %v898 = vrcp.pop %v832
    %v899 = vmul.f32 1.0, %v898
    %v900 = vrcp.pop %v833
    %v901 = vmul.f32 1.0, %v900
    %v902 = vrcp.pop %v834
    %v903 = vmul.f32 1.0, %v902
    %v904 = vrcp.pop %v835
    %v905 = vmul.f32 1.0, %v904
    %v906 = vrcp.pop %v836
    %v907 = vmul.f32 1.0, %v906
    %v908 = vrcp.pop %v837
    %v909 = vmul.f32 1.0, %v908
    %v910 = vrcp.pop %v838
    %v911 = vmul.f32 1.0, %v910
    %v912 = vrcp.pop %v839
    %v913 = vmul.f32 1.0, %v912
    %v914 = vrcp.pop %v840
    %v915 = vmul.f32 1.0, %v914
    %v916 = vrcp.pop %v841
    %v917 = vmul.f32 1.0, %v916
    %v918 = vrcp.pop %v842
    %v919 = vmul.f32 1.0, %v918
    %v920 = vrcp.pop %v843
    %v921 = vmul.f32 1.0, %v920
    %v922 = vrcp.pop %v844
    %v923 = vmul.f32 1.0, %v922
    %v924 = vrcp.pop %v845
    %v925 = vmul.f32 1.0, %v924
    %v926 = vrcp.pop %v846
    %v927 = vmul.f32 1.0, %v926
    %v928 = vrcp.pop %v847
    %v929 = vmul.f32 1.0, %v928
    %v930 = vrcp.pop %v848
    %v931 = vmul.f32 1.0, %v930
    %v932 = vrcp.pop %v849
    %v933 = vmul.f32 1.0, %v932
    %v934 = vrcp.pop %v850
    %v935 = vmul.f32 1.0, %v934
    %v936 = vrcp.pop %v851
    %v937 = vmul.f32 1.0, %v936
    %v938 = vrcp.pop %v852
    %v939 = vmul.f32 1.0, %v938
    %v940 = vrcp.pop %v853
    %v941 = vmul.f32 1.0, %v940
    %v942 = vrcp.pop %v854
    %v943 = vmul.f32 1.0, %v942
    %v944 = vrcp.pop %v855
    %v945 = vmul.f32 1.0, %v944
    %v946 = vrcp.pop %v856
    %v947 = vmul.f32 1.0, %v946
    %v948 = vrcp.pop %v857
    %v949 = vmul.f32 1.0, %v948
    %v950 = vrcp.pop %v858
    %v951 = vmul.f32 1.0, %v950
    %v952 = vrcp.pop %v859
    %v953 = vmul.f32 1.0, %v952
    %v954 = vrcp.pop %v860
    %v955 = vmul.f32 1.0, %v954
    %v956 = vrcp.pop %v861
    %v957 = vmul.f32 1.0, %v956
    %v958 = vrcp.pop %v862
    %v959 = vmul.f32 1.0, %v958
    %v960 = vrcp.pop %v863
    %v961 = vmul.f32 1.0, %v960
    %v962 = vrcp.pop %v864
    %v963 = vmul.f32 1.0, %v962
    %v964 = vrcp.pop %v865
    %v965 = vmul.f32 1.0, %v964
    %v966 = vrcp.pop %v866
    %v967 = vmul.f32 1.0, %v966
    %v968 = vrcp.pop %v867
    %v969 = vmul.f32 1.0, %v968
    %v970 = vrcp.pop %v868
    %v971 = vmul.f32 1.0, %v970
    %v972 = vrcp.pop %v869
    %v973 = vmul.f32 1.0, %v972
    %v974 = vrcp.pop %v870
    %v975 = vmul.f32 1.0, %v974
    %v976 = vrcp.pop %v871
    %v977 = vmul.f32 1.0, %v976
    %v978 = vrcp.pop %v872
    %v979 = vmul.f32 1.0, %v978
    %v980 = vrcp.pop %v873
    %v981 = vmul.f32 1.0, %v980
    %v982 = vrcp.pop %v874
    %v983 = vmul.f32 1.0, %v982
    %v984 = vrcp.pop %v875
    %v985 = vmul.f32 1.0, %v984
    %v986 = vrcp.pop %v876
    %v987 = vmul.f32 1.0, %v986
    %v988 = vrcp.pop %v877
    %v989 = vmul.f32 1.0, %v988
    %v990 = vrcp.pop %v878
    %v991 = vmul.f32 1.0, %v990
    %v992 = vrcp.pop %v879
    %v993 = vmul.f32 1.0, %v992
    %v994 = vrcp.pop %v880
    %v995 = vmul.f32 1.0, %v994
    %v996 = vrcp.pop %v881
    %v997 = vmul.f32 1.0, %v996
    %v998 = vrcp.pop %v882
    %v999 = vmul.f32 1.0, %v998
    %v1000 = vrcp.pop %v883
    %v1001 = vmul.f32 1.0, %v1000
    %v1002 = vrcp.pop %v884
    %v1003 = vmul.f32 1.0, %v1002
    %v1004 = vrcp.pop %v885
    %v1005 = vmul.f32 1.0, %v1004
    %v1006 = vrcp.pop %v886
    %v1007 = vmul.f32 1.0, %v1006
    %v1008 = vrcp.pop %v887
    %v1009 = vmul.f32 1.0, %v1008
    %v1010 = vrcp.pop %v888
    %v1011 = vmul.f32 1.0, %v1010
    %v1012 = vrcp.pop %v889
    %v1013 = vmul.f32 1.0, %v1012
    %v1014 = vrcp.pop %v890
    %v1015 = vmul.f32 1.0, %v1014
    %v1016 = vrcp.pop %v891
    %v1017 = vmul.f32 1.0, %v1016
    %v1018 = vrcp.pop %v892
    %v1019 = vmul.f32 1.0, %v1018
    %v1020 = vrcp.pop %v893
    %v1021 = vmul.f32 1.0, %v1020
    %v1022 = vmul.f32 %v384, %v895
    %v1023 = vmul.f32 %v387, %v897
    %v1024 = vmul.f32 %v392, %v899
    %v1025 = vmul.f32 %v395, %v901
    %v1026 = vmul.f32 %v400, %v903
    %v1027 = vmul.f32 %v403, %v905
    %v1028 = vmul.f32 %v408, %v907
    %v1029 = vmul.f32 %v411, %v909
    %v1030 = vmul.f32 %v416, %v911
    %v1031 = vmul.f32 %v419, %v913
    %v1032 = vmul.f32 %v424, %v915
    %v1033 = vmul.f32 %v427, %v917
    %v1034 = vmul.f32 %v432, %v919
    %v1035 = vmul.f32 %v435, %v921
    %v1036 = vmul.f32 %v440, %v923
    %v1037 = vmul.f32 %v443, %v925
    %v1038 = vmul.f32 %v448, %v927
    %v1039 = vmul.f32 %v451, %v929
    %v1040 = vmul.f32 %v456, %v931
    %v1041 = vmul.f32 %v459, %v933
    %v1042 = vmul.f32 %v464, %v935
    %v1043 = vmul.f32 %v467, %v937
    %v1044 = vmul.f32 %v472, %v939
    %v1045 = vmul.f32 %v475, %v941
    %v1046 = vmul.f32 %v480, %v943
    %v1047 = vmul.f32 %v483, %v945
    %v1048 = vmul.f32 %v488, %v947
    %v1049 = vmul.f32 %v491, %v949
    %v1050 = vmul.f32 %v496, %v951
    %v1051 = vmul.f32 %v499, %v953
    %v1052 = vmul.f32 %v504, %v955
    %v1053 = vmul.f32 %v507, %v957
    %v1054 = vmul.f32 %v512, %v959
    %v1055 = vmul.f32 %v515, %v961
    %v1056 = vmul.f32 %v520, %v963
    %v1057 = vmul.f32 %v523, %v965
    %v1058 = vmul.f32 %v528, %v967
    %v1059 = vmul.f32 %v531, %v969
    %v1060 = vmul.f32 %v536, %v971
    %v1061 = vmul.f32 %v539, %v973
    %v1062 = vmul.f32 %v544, %v975
    %v1063 = vmul.f32 %v547, %v977
    %v1064 = vmul.f32 %v552, %v979
    %v1065 = vmul.f32 %v555, %v981
    %v1066 = vmul.f32 %v560, %v983
    %v1067 = vmul.f32 %v563, %v985
    %v1068 = vmul.f32 %v568, %v987
    %v1069 = vmul.f32 %v571, %v989
    %v1070 = vmul.f32 %v576, %v991
    %v1071 = vmul.f32 %v579, %v993
    %v1072 = vmul.f32 %v584, %v995
    %v1073 = vmul.f32 %v587, %v997
    %v1074 = vmul.f32 %v592, %v999
    %v1075 = vmul.f32 %v595, %v1001
    %v1076 = vmul.f32 %v600, %v1003
    %v1077 = vmul.f32 %v603, %v1005
    %v1078 = vmul.f32 %v608, %v1007
    %v1079 = vmul.f32 %v611, %v1009
    %v1080 = vmul.f32 %v616, %v1011
    %v1081 = vmul.f32 %v619, %v1013
    %v1082 = vmul.f32 %v624, %v1015
    %v1083 = vmul.f32 %v627, %v1017
    %v1084 = vmul.f32 %v632, %v1019
    %v1085 = vmul.f32 %v635, %v1021
    %v1086 = vpack.c.bf16 %v1023, %v1022
    %v1087 = vpack.c.bf16 %v1025, %v1024
    %v1088 = vpack.c.bf16 %v1027, %v1026
    %v1089 = vpack.c.bf16 %v1029, %v1028
    %v1090 = vpack.c.bf16 %v1031, %v1030
    %v1091 = vpack.c.bf16 %v1033, %v1032
    %v1092 = vpack.c.bf16 %v1035, %v1034
    %v1093 = vpack.c.bf16 %v1037, %v1036
    %v1094 = vpack.c.bf16 %v1039, %v1038
    %v1095 = vpack.c.bf16 %v1041, %v1040
    %v1096 = vpack.c.bf16 %v1043, %v1042
    %v1097 = vpack.c.bf16 %v1045, %v1044
    %v1098 = vpack.c.bf16 %v1047, %v1046
    %v1099 = vpack.c.bf16 %v1049, %v1048
    %v1100 = vpack.c.bf16 %v1051, %v1050
    %v1101 = vpack.c.bf16 %v1053, %v1052
    %v1102 = vpack.c.bf16 %v1055, %v1054
    %v1103 = vpack.c.bf16 %v1057, %v1056
    %v1104 = vpack.c.bf16 %v1059, %v1058
    %v1105 = vpack.c.bf16 %v1061, %v1060
    %v1106 = vpack.c.bf16 %v1063, %v1062
    %v1107 = vpack.c.bf16 %v1065, %v1064
    %v1108 = vpack.c.bf16 %v1067, %v1066
    %v1109 = vpack.c.bf16 %v1069, %v1068
    %v1110 = vpack.c.bf16 %v1071, %v1070
    %v1111 = vpack.c.bf16 %v1073, %v1072
    %v1112 = vpack.c.bf16 %v1075, %v1074
    %v1113 = vpack.c.bf16 %v1077, %v1076
    %v1114 = vpack.c.bf16 %v1079, %v1078
    %v1115 = vpack.c.bf16 %v1081, %v1080
    %v1116 = vpack.c.bf16 %v1083, %v1082
    %v1117 = vpack.c.bf16 %v1085, %v1084
    %v1150 = vunpack.c.l.b16 %v1086
    %v1151 = vunpack.c.h.b16 %v1086
    %v1152 = vunpack.c.l.b16 %v1087
    %v1153 = vunpack.c.h.b16 %v1087
    %v1154 = vunpack.c.l.b16 %v1088
    %v1155 = vunpack.c.h.b16 %v1088
    %v1156 = vunpack.c.l.b16 %v1089
    %v1157 = vunpack.c.h.b16 %v1089
    %v1158 = vunpack.c.l.b16 %v1090
    %v1159 = vunpack.c.h.b16 %v1090
    %v1160 = vunpack.c.l.b16 %v1091
    %v1161 = vunpack.c.h.b16 %v1091
    %v1162 = vunpack.c.l.b16 %v1092
    %v1163 = vunpack.c.h.b16 %v1092
    %v1164 = vunpack.c.l.b16 %v1093
    %v1165 = vunpack.c.h.b16 %v1093
    %v1166 = vunpack.c.l.b16 %v1094
    %v1167 = vunpack.c.h.b16 %v1094
    %v1168 = vunpack.c.l.b16 %v1095
    %v1169 = vunpack.c.h.b16 %v1095
    %v1170 = vunpack.c.l.b16 %v1096
    %v1171 = vunpack.c.h.b16 %v1096
    %v1172 = vunpack.c.l.b16 %v1097
    %v1173 = vunpack.c.h.b16 %v1097
    %v1174 = vunpack.c.l.b16 %v1098
    %v1175 = vunpack.c.h.b16 %v1098
    %v1176 = vunpack.c.l.b16 %v1099
    %v1177 = vunpack.c.h.b16 %v1099
    %v1178 = vunpack.c.l.b16 %v1100
    %v1179 = vunpack.c.h.b16 %v1100
    %v1180 = vunpack.c.l.b16 %v1101
    %v1181 = vunpack.c.h.b16 %v1101
    %v1182 = vunpack.c.l.b16 %v1102
    %v1183 = vunpack.c.h.b16 %v1102
    %v1184 = vunpack.c.l.b16 %v1103
    %v1185 = vunpack.c.h.b16 %v1103
    %v1186 = vunpack.c.l.b16 %v1104
    %v1187 = vunpack.c.h.b16 %v1104
    %v1188 = vunpack.c.l.b16 %v1105
    %v1189 = vunpack.c.h.b16 %v1105
    %v1190 = vunpack.c.l.b16 %v1106
    %v1191 = vunpack.c.h.b16 %v1106
    %v1192 = vunpack.c.l.b16 %v1107
    %v1193 = vunpack.c.h.b16 %v1107
    %v1194 = vunpack.c.l.b16 %v1108
    %v1195 = vunpack.c.h.b16 %v1108
    %v1196 = vunpack.c.l.b16 %v1109
    %v1197 = vunpack.c.h.b16 %v1109
    %v1198 = vunpack.c.l.b16 %v1110
    %v1199 = vunpack.c.h.b16 %v1110
    %v1200 = vunpack.c.l.b16 %v1111
    %v1201 = vunpack.c.h.b16 %v1111
    %v1202 = vunpack.c.l.b16 %v1112
    %v1203 = vunpack.c.h.b16 %v1112
    %v1204 = vunpack.c.l.b16 %v1113
    %v1205 = vunpack.c.h.b16 %v1113
    %v1206 = vunpack.c.l.b16 %v1114
    %v1207 = vunpack.c.h.b16 %v1114
    %v1208 = vunpack.c.l.b16 %v1115
    %v1209 = vunpack.c.h.b16 %v1115
    %v1210 = vunpack.c.l.b16 %v1116
    %v1211 = vunpack.c.h.b16 %v1116
    %v1212 = vunpack.c.l.b16 %v1117
    %v1213 = vunpack.c.h.b16 %v1117
    %v1214 = vpack.c.b16 %v1150, %v1150
    %v1215 = vpack.c.b16 %v1151, %v1151
    %v1216 = vpack.c.b16 %v1152, %v1152
    %v1217 = vpack.c.b16 %v1153, %v1153
    %v1218 = vpack.c.b16 %v1154, %v1154
    %v1219 = vpack.c.b16 %v1155, %v1155
    %v1220 = vpack.c.b16 %v1156, %v1156
    %v1221 = vpack.c.b16 %v1157, %v1157
    %v1222 = vpack.c.b16 %v1158, %v1158
    %v1223 = vpack.c.b16 %v1159, %v1159
    %v1224 = vpack.c.b16 %v1160, %v1160
    %v1225 = vpack.c.b16 %v1161, %v1161
    %v1226 = vpack.c.b16 %v1162, %v1162
    %v1227 = vpack.c.b16 %v1163, %v1163
    %v1228 = vpack.c.b16 %v1164, %v1164
    %v1229 = vpack.c.b16 %v1165, %v1165
    %v1230 = vpack.c.b16 %v1166, %v1166
    %v1231 = vpack.c.b16 %v1167, %v1167
    %v1232 = vpack.c.b16 %v1168, %v1168
    %v1233 = vpack.c.b16 %v1169, %v1169
    %v1234 = vpack.c.b16 %v1170, %v1170
    %v1235 = vpack.c.b16 %v1171, %v1171
    %v1236 = vpack.c.b16 %v1172, %v1172
    %v1237 = vpack.c.b16 %v1173, %v1173
    %v1238 = vpack.c.b16 %v1174, %v1174
    %v1239 = vpack.c.b16 %v1175, %v1175
    %v1240 = vpack.c.b16 %v1176, %v1176
    %v1241 = vpack.c.b16 %v1177, %v1177
    %v1242 = vpack.c.b16 %v1178, %v1178
    %v1243 = vpack.c.b16 %v1179, %v1179
    %v1244 = vpack.c.b16 %v1180, %v1180
    %v1245 = vpack.c.b16 %v1181, %v1181
    %v1246 = vpack.c.b16 %v1182, %v1182
    %v1247 = vpack.c.b16 %v1183, %v1183
    %v1248 = vpack.c.b16 %v1184, %v1184
    %v1249 = vpack.c.b16 %v1185, %v1185
    %v1250 = vpack.c.b16 %v1186, %v1186
    %v1251 = vpack.c.b16 %v1187, %v1187
    %v1252 = vpack.c.b16 %v1188, %v1188
    %v1253 = vpack.c.b16 %v1189, %v1189
    %v1254 = vpack.c.b16 %v1190, %v1190
    %v1255 = vpack.c.b16 %v1191, %v1191
    %v1256 = vpack.c.b16 %v1192, %v1192
    %v1257 = vpack.c.b16 %v1193, %v1193
    %v1258 = vpack.c.b16 %v1194, %v1194
    %v1259 = vpack.c.b16 %v1195, %v1195
    %v1260 = vpack.c.b16 %v1196, %v1196
    %v1261 = vpack.c.b16 %v1197, %v1197
    %v1262 = vpack.c.b16 %v1198, %v1198
    %v1263 = vpack.c.b16 %v1199, %v1199
    %v1264 = vpack.c.b16 %v1200, %v1200
    %v1265 = vpack.c.b16 %v1201, %v1201
    %v1266 = vpack.c.b16 %v1202, %v1202
    %v1267 = vpack.c.b16 %v1203, %v1203
    %v1268 = vpack.c.b16 %v1204, %v1204
    %v1269 = vpack.c.b16 %v1205, %v1205
    %v1270 = vpack.c.b16 %v1206, %v1206
    %v1271 = vpack.c.b16 %v1207, %v1207
    %v1272 = vpack.c.b16 %v1208, %v1208
    %v1273 = vpack.c.b16 %v1209, %v1209
    %v1274 = vpack.c.b16 %v1210, %v1210
    %v1275 = vpack.c.b16 %v1211, %v1211
    %v1276 = vpack.c.b16 %v1212, %v1212
    %v1277 = vpack.c.b16 %v1213, %v1213
    %1342 = vst [vmem:[#allocation2] sm:$0xf] %v1214
    %1343 = vst [vmem:[#allocation2 + $0x4] sm:$0xf] %v1215
    %1344 = vst [vmem:[#allocation2 + $0x8] sm:$0xf] %v1216
    %1345 = vst [vmem:[#allocation2 + $0xc] sm:$0xf] %v1217
    %1346 = vst [vmem:[#allocation2 + $0x10] sm:$0xf] %v1218
    %1347 = vst [vmem:[#allocation2 + $0x14] sm:$0xf] %v1219
    %1348 = vst [vmem:[#allocation2 + $0x18] sm:$0xf] %v1220
    %1349 = vst [vmem:[#allocation2 + $0x1c] sm:$0xf] %v1221
    %1350 = vst [vmem:[#allocation2 + $0x20] sm:$0xf] %v1222
    %1351 = vst [vmem:[#allocation2 + $0x24] sm:$0xf] %v1223
    %1352 = vst [vmem:[#allocation2 + $0x28] sm:$0xf] %v1224
    %1353 = vst [vmem:[#allocation2 + $0x2c] sm:$0xf] %v1225
    %1354 = vst [vmem:[#allocation2 + $0x30] sm:$0xf] %v1226
    %1355 = vst [vmem:[#allocation2 + $0x34] sm:$0xf] %v1227
    %1356 = vst [vmem:[#allocation2 + $0x38] sm:$0xf] %v1228
    %1357 = vst [vmem:[#allocation2 + $0x3c] sm:$0xf] %v1229
    %1358 = vst [vmem:[#allocation2 + $0x40] sm:$0xf] %v1230
    %1359 = vst [vmem:[#allocation2 + $0x44] sm:$0xf] %v1231
    %1360 = vst [vmem:[#allocation2 + $0x48] sm:$0xf] %v1232
    %1361 = vst [vmem:[#allocation2 + $0x4c] sm:$0xf] %v1233
    %1362 = vst [vmem:[#allocation2 + $0x50] sm:$0xf] %v1234
    %1363 = vst [vmem:[#allocation2 + $0x54] sm:$0xf] %v1235
    %1364 = vst [vmem:[#allocation2 + $0x58] sm:$0xf] %v1236
    %1365 = vst [vmem:[#allocation2 + $0x5c] sm:$0xf] %v1237
    %1366 = vst [vmem:[#allocation2 + $0x60] sm:$0xf] %v1238
    %1367 = vst [vmem:[#allocation2 + $0x64] sm:$0xf] %v1239
    %1368 = vst [vmem:[#allocation2 + $0x68] sm:$0xf] %v1240
    %1369 = vst [vmem:[#allocation2 + $0x6c] sm:$0xf] %v1241
    %1370 = vst [vmem:[#allocation2 + $0x70] sm:$0xf] %v1242
    %1371 = vst [vmem:[#allocation2 + $0x74] sm:$0xf] %v1243
    %1372 = vst [vmem:[#allocation2 + $0x78] sm:$0xf] %v1244
    %1373 = vst [vmem:[#allocation2 + $0x7c] sm:$0xf] %v1245
    %1374 = vst [vmem:[#allocation2 + $0x80] sm:$0xf] %v1246
    %1375 = vst [vmem:[#allocation2 + $0x84] sm:$0xf] %v1247
    %1376 = vst [vmem:[#allocation2 + $0x88] sm:$0xf] %v1248
    %1377 = vst [vmem:[#allocation2 + $0x8c] sm:$0xf] %v1249
    %1378 = vst [vmem:[#allocation2 + $0x90] sm:$0xf] %v1250
    %1379 = vst [vmem:[#allocation2 + $0x94] sm:$0xf] %v1251
    %1380 = vst [vmem:[#allocation2 + $0x98] sm:$0xf] %v1252
    %1381 = vst [vmem:[#allocation2 + $0x9c] sm:$0xf] %v1253
    %1382 = vst [vmem:[#allocation2 + $0xa0] sm:$0xf] %v1254
    %1383 = vst [vmem:[#allocation2 + $0xa4] sm:$0xf] %v1255
    %1384 = vst [vmem:[#allocation2 + $0xa8] sm:$0xf] %v1256
    %1385 = vst [vmem:[#allocation2 + $0xac] sm:$0xf] %v1257
    %1386 = vst [vmem:[#allocation2 + $0xb0] sm:$0xf] %v1258
    %1387 = vst [vmem:[#allocation2 + $0xb4] sm:$0xf] %v1259
    %1388 = vst [vmem:[#allocation2 + $0xb8] sm:$0xf] %v1260
    %1389 = vst [vmem:[#allocation2 + $0xbc] sm:$0xf] %v1261
    %1390 = vst [vmem:[#allocation2 + $0xc0] sm:$0xf] %v1262
    %1391 = vst [vmem:[#allocation2 + $0xc4] sm:$0xf] %v1263
    %1392 = vst [vmem:[#allocation2 + $0xc8] sm:$0xf] %v1264
    %1393 = vst [vmem:[#allocation2 + $0xcc] sm:$0xf] %v1265
    %1394 = vst [vmem:[#allocation2 + $0xd0] sm:$0xf] %v1266
    %1395 = vst [vmem:[#allocation2 + $0xd4] sm:$0xf] %v1267
    %1396 = vst [vmem:[#allocation2 + $0xd8] sm:$0xf] %v1268
    %1397 = vst [vmem:[#allocation2 + $0xdc] sm:$0xf] %v1269
    %1398 = vst [vmem:[#allocation2 + $0xe0] sm:$0xf] %v1270
    %1399 = vst [vmem:[#allocation2 + $0xe4] sm:$0xf] %v1271
    %1400 = vst [vmem:[#allocation2 + $0xe8] sm:$0xf] %v1272
    %1401 = vst [vmem:[#allocation2 + $0xec] sm:$0xf] %v1273
    %1402 = vst [vmem:[#allocation2 + $0xf0] sm:$0xf] %v1274
    %1403 = vst [vmem:[#allocation2 + $0xf4] sm:$0xf] %v1275
    %1404 = vst [vmem:[#allocation2 + $0xf8] sm:$0xf] %v1276
    %1405 = vst [vmem:[#allocation2 + $0xfc] sm:$0xf] %v1277
    // Predicated region
    $region14: #{tpu_custom_call.1} parent=1 // pred_check
      _
    $region15: #{tpu_custom_call.1} parent=1 // pred_check_branch
      %1407 = sbr.rel (0) target = $region17
    $region16: #{tpu_custom_call.1} parent=1 // pred_region
      %s1409 = ssub.s32 4096, 4096
      %1410 = vsyncadd [#allocation3], %s1409
      %s1411 = sshll.u32 [#allocation2], 4
      %s1412 = int_to_ptr.vmem [resolvable:$true] %s1411
      %1417 = dma.vmem_to_hbm [thread:$0]  %s1412, 4096, %s3, [#allocation3], 64, 64, 4
    $region17: #{tpu_custom_call.1} parent=1 // pred_fallthru
      _
    // Predicated region
    $region18: #{tpu_custom_call.1} parent=1 // pred_check
      _
    $region19: #{tpu_custom_call.1} parent=1 // pred_check_branch
      %1419 = sbr.rel (0) target = $region21
    $region20: #{tpu_custom_call.1} parent=1 // pred_region
      %1420 = dma.done [#allocation3], 4096
    $region21: #{tpu_custom_call.1} parent=1 // pred_fallthru
      _
    %1421 = vsyncpa [#allocation3], 1

</llo_original>
